<compile_context>
chip_gen: v7x
topology: tpu7x:2x2x1
jax: 0.10.0
libtpu: 0.0.40
codegen_flags: <defaults>
</compile_context>

<pallas_src>
import math

import jax
import jax.numpy as jnp
from jax.experimental import pallas as pl
from jax.experimental.pallas import tpu as pltpu


_TARGET_BLOCK_BYTES = 4 * 1024 * 1024   # per-buffer block target (v6e/v7x sweet spot)
_SINGLE_BLOCK_BYTES = 1 * 1024 * 1024   # at/below this, one block / one grid step is best
_VMEM_LIMIT_BYTES = 48 * 1024 * 1024    # 4 MiB blocks, in+out double-buffered = 16 MiB << 48 MiB
_MIN_GRID_STEPS = 4                     # keep the pipeline busy + both v7x TCs fed


def _ptmodule_kernel(x_ref, o_ref):
    x = x_ref[...]
    r = x + 2.0
    r = r * 3.0
    r = r - 4.0
    r = r / 5.0          # exact divide kept for bit-parity with torch.div; hidden under DMA
    # unrolled: for i in range(3): r = r + i  ->  +0 (identity, dropped) +1 +2
    r = r + 1.0
    r = r + 2.0
    o_ref[...] = r.astype(o_ref.dtype)


def _round_up(a, b):
    return -(-a // b) * b


def _round_down(a, b):
    return (a // b) * b


def _min_sublane(dtype):
    # Native sublane tile depends on packing: f32 -> 8, bf16/f16 -> 16, i8/fp8 -> 32.
    return {4: 8, 2: 16, 1: 32}.get(jnp.dtype(dtype).itemsize, 8)


def _padded_bytes(shape, itemsize, sub):
    if len(shape) == 0:
        return itemsize
    dims = list(shape)
    dims[-1] = _round_up(dims[-1], 128)
    if len(dims) >= 2:
        dims[-2] = _round_up(dims[-2], sub)
    return math.prod(dims) * itemsize


def _tile_rows_cols(M, L, itemsize, sub):
    """(tile_m, tile_l) for a 2-D view, targeting ~_TARGET_BLOCK_BYTES blocks."""
    L_pad = _round_up(L, 128)

    # Lane tile: keep rows whole unless even a minimal-height block busts the budget.
    if L > 128 and min(M, sub) * L_pad * itemsize > _TARGET_BLOCK_BYTES:
        tile_l = max(128, _round_down(_TARGET_BLOCK_BYTES // (min(M, sub) * itemsize), 128))
        if tile_l >= L:
            tile_l = L
    else:
        tile_l = L

    # Row tile: fill the budget, then cap so large arrays always get >= 2
    # (ideally >= _MIN_GRID_STEPS) pipelined grid steps.
    row_bytes = _round_up(tile_l, 128) * itemsize
    tile_m = max(sub, _round_down(_TARGET_BLOCK_BYTES // row_bytes, sub))
    for steps in (_MIN_GRID_STEPS, 2):
        cap = _round_down(M // steps, sub)
        if cap >= sub:
            tile_m = min(tile_m, cap)
            break
    if tile_m >= M:
        tile_m = M
    elif pl.cdiv(M, tile_m) % 2 == 1:
        # Best effort: even row-grid length so v7x's 2 TensorCores split it evenly.
        alt = _round_up(pl.cdiv(M, pl.cdiv(M, tile_m) + 1), sub)
        if sub <= alt < M and pl.cdiv(M, alt) % 2 == 0:
            tile_m = alt
    return tile_m, tile_l


def _tile_batch(B, slice_bytes):
    """Leading-dim tile for a 3-D (batch, rows, lanes) view whose minor dims stay whole."""
    tile_b = max(1, _TARGET_BLOCK_BYTES // slice_bytes)
    for steps in (_MIN_GRID_STEPS, 2):
        if B >= steps:
            tile_b = min(tile_b, B // steps)
            break
    tile_b = max(1, min(tile_b, B))
    if tile_b < B and pl.cdiv(B, tile_b) % 2 == 1:
        alt = pl.cdiv(B, pl.cdiv(B, tile_b) + 1)
        if 1 <= alt < B and pl.cdiv(B, alt) % 2 == 0:
            tile_b = alt
    return tile_b


def ptmodule_forward(x, *, donate_input=False):
    """Applies the PtModule elementwise chain via a Pallas TPU kernel.

    Set donate_input=True (and donate x at the jit boundary) to alias the output
    onto the input buffer and skip the output allocation.
    """
    orig_shape = x.shape

    # torch.div is true division: integer inputs produce a float output.
    if not jnp.issubdtype(x.dtype, jnp.floating):
        x = x.astype(jnp.float32)
    dtype = x.dtype
    itemsize = jnp.dtype(dtype).itemsize
    sub = _min_sublane(dtype)

    # Build a 2-D (or 3-D) view WITHOUT relayout:
    #  * collapsing leading dims (everything above the minor two) is always free;
    #  * also folding dim -2 into the rows is free only when shape[-2] is a
    #    multiple of the native sublane tile.
    if x.ndim == 0:
        view = x.reshape(1, 1)
    elif x.ndim == 1:
        view = x.reshape(1, x.shape[0])
    elif x.ndim == 2:
        view = x
    else:
        B = math.prod(x.shape[:-2])
        A, L = x.shape[-2], x.shape[-1]
        if A % sub == 0:
            view = x.reshape(B * A, L)            # free bitcast
        elif _padded_bytes((A, L), itemsize, sub) <= 2 * _TARGET_BLOCK_BYTES:
            view = x.reshape(B, A, L)             # free (leading dims only)
        else:
            # Rare: a single (A, L) slice would bust the VMEM block budget and A
            # is not sublane-aligned -> accept one relayout pass, stay VMEM-safe.
            view = x.reshape(B * A, L)

    total_bytes = _padded_bytes(view.shape, itemsize, sub)

    if total_bytes <= _SINGLE_BLOCK_BYTES:
        # Small array: one full-view block, one grid step (per-step overhead dominates otherwise).
        block_shape = tuple(view.shape)
        grid = (1,)
        nd = len(block_shape)
        index_map = lambda i: (0,) * nd
        dims = ("parallel",)
    elif view.ndim == 2:
        M, L = view.shape
        tile_m, tile_l = _tile_rows_cols(M, L, itemsize, sub)
        block_shape = (tile_m, tile_l)
        grid = (pl.cdiv(M, tile_m), pl.cdiv(L, tile_l))
        index_map = lambda i, j: (i, j)
        dims = ("parallel", "parallel")
    else:
        B, A, L = view.shape
        tile_b = _tile_batch(B, _padded_bytes((A, L), itemsize, sub))
        block_shape = (tile_b, A, L)
        grid = (pl.cdiv(B, tile_b),)
        index_map = lambda i: (i, 0, 0)
        dims = ("parallel",)

    call_kwargs = {"input_output_aliases": {0: 0}} if donate_input else {}
    out = pl.pallas_call(
        _ptmodule_kernel,
        out_shape=jax.ShapeDtypeStruct(view.shape, dtype),
        grid_spec=pltpu.PrefetchScalarGridSpec(
            num_scalar_prefetch=0,
            grid=grid,
            in_specs=[pl.BlockSpec(block_shape, index_map)],
            out_specs=pl.BlockSpec(block_shape, index_map),
        ),
        compiler_params=pltpu.CompilerParams(
            dimension_semantics=dims,
            vmem_limit_bytes=_VMEM_LIMIT_BYTES,
        ),
        **call_kwargs,
    )(view)

    # Inverse of the (free) collapse above — also a free bitcast.
    return out if out.shape == orig_shape else out.reshape(orig_shape)


def _reference(x):
    r = x + 2.0
    r = r * 3.0
    r = r - 4.0
    r = r / 5.0
    for i in range(3):
        r = r + i
    return r


if __name__ == "__main__":
    key = jax.random.PRNGKey(0)
    x = jax.random.normal(key, (2, 4, 16, 16), dtype=jnp.float32)

    out = jax.block_until_ready(ptmodule_forward(x))

    ref = _reference(x)
    assert out.shape == x.shape
    assert out.dtype == x.dtype
    assert jnp.allclose(out, ref, rtol=1e-6, atol=1e-6), "mismatch vs reference"

    print("KERNEL_OK")
</pallas_src>

<mosaic_0001>
module attributes {stable_mosaic.version = 11 : i64} {
  func.func @_ptmodule_kernel(%arg0: i32, %arg1: memref<128x16xf32, #tpu.memory_space<vmem>>, %arg2: memref<128x16xf32, #tpu.memory_space<vmem>>) attributes {dimension_semantics = [#tpu.dimension_semantics<parallel>], iteration_bounds = array<i64: 1>, scalar_prefetch = 0 : i64, scratch_operands = 0 : i64, tpu.core_type = #tpu.core_type<tc>, window_params = [{pipeline_mode = #tpu.pipeline_mode<synchronous>, transform_indices = @transform_0, window_bounds = array<i64: 128, 16>}, {pipeline_mode = #tpu.pipeline_mode<synchronous>, transform_indices = @transform_1, window_bounds = array<i64: 128, 16>}]} {
    %c0 = arith.constant 0 : index
    %c0_0 = arith.constant 0 : index
    %0 = vector.load %arg1[%c0, %c0_0] : memref<128x16xf32, #tpu.memory_space<vmem>>, vector<128x16xf32>
    %cst = arith.constant 2.000000e+00 : f32
    %1 = vector.broadcast %cst : f32 to vector<128x16xf32>
    %2 = arith.addf %0, %1 : vector<128x16xf32>
    %cst_1 = arith.constant 3.000000e+00 : f32
    %3 = vector.broadcast %cst_1 : f32 to vector<128x16xf32>
    %4 = arith.mulf %2, %3 : vector<128x16xf32>
    %cst_2 = arith.constant 4.000000e+00 : f32
    %5 = vector.broadcast %cst_2 : f32 to vector<128x16xf32>
    %6 = arith.subf %4, %5 : vector<128x16xf32>
    %cst_3 = arith.constant 5.000000e+00 : f32
    %7 = vector.broadcast %cst_3 : f32 to vector<128x16xf32>
    %8 = arith.divf %6, %7 : vector<128x16xf32>
    %cst_4 = arith.constant 1.000000e+00 : f32
    %9 = vector.broadcast %cst_4 : f32 to vector<128x16xf32>
    %10 = arith.addf %8, %9 : vector<128x16xf32>
    %cst_5 = arith.constant 2.000000e+00 : f32
    %11 = vector.broadcast %cst_5 : f32 to vector<128x16xf32>
    %12 = arith.addf %10, %11 : vector<128x16xf32>
    %c0_6 = arith.constant 0 : index
    %c0_7 = arith.constant 0 : index
    %13 = vector.load %arg2[%c0_6, %c0_7] : memref<128x16xf32, #tpu.memory_space<vmem>>, vector<128x16xf32>
    tpu.vector_store %arg2[%c0_6, %c0_7], %12 {strides = array<i32>} : memref<128x16xf32, #tpu.memory_space<vmem>>, vector<128x16xf32>,
    return
  }
  func.func @transform_0(%arg0: i32) -> (i32, i32) {
    %c0_i32 = arith.constant 0 : i32
    %c0_i32_0 = arith.constant 0 : i32
    %c0_i32_1 = arith.constant 0 : i32
    return %c0_i32, %c0_i32_0 : i32, i32
  }
  func.func @transform_1(%arg0: i32) -> (i32, i32) {
    %c0_i32 = arith.constant 0 : i32
    %c0_i32_0 = arith.constant 0 : i32
    %c0_i32_1 = arith.constant 0 : i32
    return %c0_i32, %c0_i32_0 : i32, i32
  }
}

</mosaic_0001>

<llo_original>
// kernel: tpu_custom_call.1
$region0: #{tpu_custom_call.1}
  #allocation0 [shape = 'u32[]', space=smem, size = 0x4, offset = 0x4, fixed_abs, tag = 'smem constant byte address 0x4 - core index']
  #allocation1 [shape = 'u32[144,128]{1,0:T(1,128)}', space=vmem, size = 0x12000, scoped, tag = 'internal scratch']
  %s0 = inlined_call_operand.vmem [shape: f32[128,16], index: 0, kind: input, shape index: {}]
  %s1 = inlined_call_operand.vmem [shape: f32[128,16], index: 1, kind: output, shape index: {}]
  %s2 = sld [smem:[#allocation0]]
  $region14: #{tpu_custom_call.1} parent=0
    _
  %s4 = ssub.s32 1, %s2
  %s5 = scalar_select 0, %s4, %s2
  // Predicated region
  $region2: #{tpu_custom_call.1} parent=0 // pred_check
    _
  $region3: #{tpu_custom_call.1} parent=0 // pred_check_branch
    %7 = sbr.rel (0) target = $region5
  $region4: #{tpu_custom_call.1} parent=0 // pred_region
    _
  $region5: #{tpu_custom_call.1} parent=0 // pred_fallthru
    _
  %v8 = vld [vmem:[%s0] sm:$0xff]
  %v9 = vld [vmem:[%s0 + $0x8] sm:$0xff]
  %v10 = vld [vmem:[%s0 + $0x10] sm:$0xff]
  %v11 = vld [vmem:[%s0 + $0x18] sm:$0xff]
  %v12 = vld [vmem:[%s0 + $0x20] sm:$0xff]
  %v13 = vld [vmem:[%s0 + $0x28] sm:$0xff]
  %v14 = vld [vmem:[%s0 + $0x30] sm:$0xff]
  %v15 = vld [vmem:[%s0 + $0x38] sm:$0xff]
  %v16 = vld [vmem:[%s0 + $0x40] sm:$0xff]
  %v17 = vld [vmem:[%s0 + $0x48] sm:$0xff]
  %v18 = vld [vmem:[%s0 + $0x50] sm:$0xff]
  %v19 = vld [vmem:[%s0 + $0x58] sm:$0xff]
  %v20 = vld [vmem:[%s0 + $0x60] sm:$0xff]
  %v21 = vld [vmem:[%s0 + $0x68] sm:$0xff]
  %v22 = vld [vmem:[%s0 + $0x70] sm:$0xff]
  %v23 = vld [vmem:[%s0 + $0x78] sm:$0xff]
  %v24 = vadd.f32 %v8, 2.0
  %v25 = vadd.f32 %v9, 2.0
  %v26 = vadd.f32 %v10, 2.0
  %v27 = vadd.f32 %v11, 2.0
  %v28 = vadd.f32 %v12, 2.0
  %v29 = vadd.f32 %v13, 2.0
  %v30 = vadd.f32 %v14, 2.0
  %v31 = vadd.f32 %v15, 2.0
  %v32 = vadd.f32 %v16, 2.0
  %v33 = vadd.f32 %v17, 2.0
  %v34 = vadd.f32 %v18, 2.0
  %v35 = vadd.f32 %v19, 2.0
  %v36 = vadd.f32 %v20, 2.0
  %v37 = vadd.f32 %v21, 2.0
  %v38 = vadd.f32 %v22, 2.0
  %v39 = vadd.f32 %v23, 2.0
  %v40 = vmul.f32 %v24, 3.0
  %v41 = vmul.f32 %v25, 3.0
  %v42 = vmul.f32 %v26, 3.0
  %v43 = vmul.f32 %v27, 3.0
  %v44 = vmul.f32 %v28, 3.0
  %v45 = vmul.f32 %v29, 3.0
  %v46 = vmul.f32 %v30, 3.0
  %v47 = vmul.f32 %v31, 3.0
  %v48 = vmul.f32 %v32, 3.0
  %v49 = vmul.f32 %v33, 3.0
  %v50 = vmul.f32 %v34, 3.0
  %v51 = vmul.f32 %v35, 3.0
  %v52 = vmul.f32 %v36, 3.0
  %v53 = vmul.f32 %v37, 3.0
  %v54 = vmul.f32 %v38, 3.0
  %v55 = vmul.f32 %v39, 3.0
  %v56 = vsub.f32 %v40, 4.0
  %v57 = vsub.f32 %v41, 4.0
  %v58 = vsub.f32 %v42, 4.0
  %v59 = vsub.f32 %v43, 4.0
  %v60 = vsub.f32 %v44, 4.0
  %v61 = vsub.f32 %v45, 4.0
  %v62 = vsub.f32 %v46, 4.0
  %v63 = vsub.f32 %v47, 4.0
  %v64 = vsub.f32 %v48, 4.0
  %v65 = vsub.f32 %v49, 4.0
  %v66 = vsub.f32 %v50, 4.0
  %v67 = vsub.f32 %v51, 4.0
  %v68 = vsub.f32 %v52, 4.0
  %v69 = vsub.f32 %v53, 4.0
  %v70 = vsub.f32 %v54, 4.0
  %v71 = vsub.f32 %v55, 4.0
  %v72 = vrcp.pop 5.0
  %v73 = vmul.f32 %v56, %v72
  %v74 = vmul.f32 %v57, %v72
  %v75 = vmul.f32 %v58, %v72
  %v76 = vmul.f32 %v59, %v72
  %v77 = vmul.f32 %v60, %v72
  %v78 = vmul.f32 %v61, %v72
  %v79 = vmul.f32 %v62, %v72
  %v80 = vmul.f32 %v63, %v72
  %v81 = vmul.f32 %v64, %v72
  %v82 = vmul.f32 %v65, %v72
  %v83 = vmul.f32 %v66, %v72
  %v84 = vmul.f32 %v67, %v72
  %v85 = vmul.f32 %v68, %v72
  %v86 = vmul.f32 %v69, %v72
  %v87 = vmul.f32 %v70, %v72
  %v88 = vmul.f32 %v71, %v72
  %v89 = vadd.f32 %v73, 1.0
  %v90 = vadd.f32 %v74, 1.0
  %v91 = vadd.f32 %v75, 1.0
  %v92 = vadd.f32 %v76, 1.0
  %v93 = vadd.f32 %v77, 1.0
  %v94 = vadd.f32 %v78, 1.0
  %v95 = vadd.f32 %v79, 1.0
  %v96 = vadd.f32 %v80, 1.0
  %v97 = vadd.f32 %v81, 1.0
  %v98 = vadd.f32 %v82, 1.0
  %v99 = vadd.f32 %v83, 1.0
  %v100 = vadd.f32 %v84, 1.0
  %v101 = vadd.f32 %v85, 1.0
  %v102 = vadd.f32 %v86, 1.0
  %v103 = vadd.f32 %v87, 1.0
  %v104 = vadd.f32 %v88, 1.0
  %v105 = vadd.f32 %v89, 2.0
  %v106 = vadd.f32 %v90, 2.0
  %v107 = vadd.f32 %v91, 2.0
  %v108 = vadd.f32 %v92, 2.0
  %v109 = vadd.f32 %v93, 2.0
  %v110 = vadd.f32 %v94, 2.0
  %v111 = vadd.f32 %v95, 2.0
  %v112 = vadd.f32 %v96, 2.0
  %v113 = vadd.f32 %v97, 2.0
  %v114 = vadd.f32 %v98, 2.0
  %v115 = vadd.f32 %v99, 2.0
  %v116 = vadd.f32 %v100, 2.0
  %v117 = vadd.f32 %v101, 2.0
  %v118 = vadd.f32 %v102, 2.0
  %v119 = vadd.f32 %v103, 2.0
  %v120 = vadd.f32 %v104, 2.0
  %vm121 = vcmask 130048
  %122 = vst.msk [vmem:[%s1] sm:$0xff] %vm121, %v105
  %123 = vst.msk [vmem:[%s1 + $0x8] sm:$0xff] %vm121, %v106
  %124 = vst.msk [vmem:[%s1 + $0x10] sm:$0xff] %vm121, %v107
  %125 = vst.msk [vmem:[%s1 + $0x18] sm:$0xff] %vm121, %v108
  %126 = vst.msk [vmem:[%s1 + $0x20] sm:$0xff] %vm121, %v109
  %127 = vst.msk [vmem:[%s1 + $0x28] sm:$0xff] %vm121, %v110
  %128 = vst.msk [vmem:[%s1 + $0x30] sm:$0xff] %vm121, %v111
  %129 = vst.msk [vmem:[%s1 + $0x38] sm:$0xff] %vm121, %v112
  %130 = vst.msk [vmem:[%s1 + $0x40] sm:$0xff] %vm121, %v113
  %131 = vst.msk [vmem:[%s1 + $0x48] sm:$0xff] %vm121, %v114
  %132 = vst.msk [vmem:[%s1 + $0x50] sm:$0xff] %vm121, %v115
  %133 = vst.msk [vmem:[%s1 + $0x58] sm:$0xff] %vm121, %v116
  %134 = vst.msk [vmem:[%s1 + $0x60] sm:$0xff] %vm121, %v117
  %135 = vst.msk [vmem:[%s1 + $0x68] sm:$0xff] %vm121, %v118
  %136 = vst.msk [vmem:[%s1 + $0x70] sm:$0xff] %vm121, %v119
  %137 = vst.msk [vmem:[%s1 + $0x78] sm:$0xff] %vm121, %v120
  // Predicated region
  $region6: #{tpu_custom_call.1} parent=0 // pred_check
    _
  $region7: #{tpu_custom_call.1} parent=0 // pred_check_branch
    %139 = sbr.rel (0) target = $region9
  $region8: #{tpu_custom_call.1} parent=0 // pred_region
    _
  $region9: #{tpu_custom_call.1} parent=0 // pred_fallthru
    _
  // Predicated region
  $region10: #{tpu_custom_call.1} parent=0 // pred_check
    _
  $region11: #{tpu_custom_call.1} parent=0 // pred_check_branch
    %141 = sbr.rel (0) target = $region13
  $region12: #{tpu_custom_call.1} parent=0 // pred_region
    _
  $region13: #{tpu_custom_call.1} parent=0 // pred_fallthru
    _

</llo_original>
